<compile_context>
chip_gen: v5e
topology: v5e:2x2
jax: 0.10.0
libtpu: 0.0.40
codegen_flags: <defaults>
</compile_context>

<pallas_src>
import functools

import jax
import jax.numpy as jnp
from jax.experimental import pallas as pl
from jax.experimental.pallas import tpu as pltpu

N_ATT_HEADS = 4
Q_DIM = K_DIM = V_DIM = OUT_DIM = 128
D_K = OUT_DIM // N_ATT_HEADS          # 32
_SCALE = 1.0 / (D_K ** 0.5)
_NEG_BIG = -1e30                      # finite "minus infinity" (avoids inf - inf NaNs)


def _round_up(x, m):
    return ((x + m - 1) // m) * m


def _mh_att_kernel(kmap_ref, nkc_ref,                       # scalar-prefetch (SMEM)
                   qp_ref, kpT_ref, vp_ref, qb_ref, kb_ref, wo_ref, bo_ref,
                   out_ref,
                   acc_scratch, m_scratch, l_scratch):
    i = pl.program_id(0)
    k_step = pl.program_id(1)
    n_k_steps = pl.num_programs(1)

    # ---- once per Nq tile: reset online-softmax state ----
    @pl.when(k_step == 0)
    def _init():
        m_scratch[...] = jnp.full_like(m_scratch, _NEG_BIG)
        l_scratch[...] = jnp.zeros_like(l_scratch)
        acc_scratch[...] = jnp.zeros_like(acc_scratch)

    # ---- per (Nq, overlapping Nk) tile: online-softmax update; skipped for non-overlapping
    #      tiles (their DMA is also skipped via the clamped index_map) ----
    @pl.when(k_step < nkc_ref[i])
    def _compute():
        mask = qb_ref[...] == kb_ref[...]                   # [bq, bk] segment membership
        qp = qp_ref[...]                                    # bf16 [bq, 128], pre-scaled
        kpT = kpT_ref[...]                                  # bf16 [128, bk], pre-projected
        vp = vp_ref[...]                                    # bf16 [bk, 128], pre-projected
        m_prev = m_scratch[...]                             # f32 [bq, 128] (lane-replicated)
        l_prev = l_scratch[...]                             # f32 [bq, 128] (lane-replicated)
        acc_prev = acc_scratch[...]                         # f32 [bq, 128]

        acc_parts, m_parts, l_parts = [], [], []
        for h in range(N_ATT_HEADS):                        # unrolled; aligned 32-lane slices
            sl = slice(h * D_K, (h + 1) * D_K)
            s = jnp.dot(qp[:, sl], kpT[sl, :],
                        preferred_element_type=jnp.float32)           # [bq, bk] f32 acc
            s = jnp.where(mask, s, jnp.float32(_NEG_BIG))              # mask BEFORE the max
            m_prev_h = m_prev[:, sl]                                   # [bq, 32] replicated
            m_new_h = jnp.maximum(m_prev_h, jnp.max(s, axis=-1, keepdims=True))
            alpha_h = jnp.exp(m_prev_h - m_new_h)                      # [bq, 32] replicated
            p = jnp.where(mask, jnp.exp(s - m_new_h[:, :1]), jnp.float32(0.0))
            l_new_h = alpha_h * l_prev[:, sl] + jnp.sum(p, axis=-1, keepdims=True)
            acc_new_h = alpha_h * acc_prev[:, sl] + jnp.dot(
                p.astype(jnp.bfloat16), vp[:, sl], preferred_element_type=jnp.float32)
            acc_parts.append(acc_new_h)
            m_parts.append(m_new_h)
            l_parts.append(l_new_h)

        # one full-width, unmasked [bq, 128] store each (no per-head lane-masked stores)
        acc_scratch[...] = jnp.concatenate(acc_parts, axis=-1)
        m_scratch[...] = jnp.concatenate(m_parts, axis=-1)
        l_scratch[...] = jnp.concatenate(l_parts, axis=-1)

    # ---- last Nk step: deferred normalization + output projection, lane-dense write ----
    @pl.when(k_step == n_k_steps - 1)
    def _finalize():
        l = l_scratch[...]                                  # [bq, 128] lane-replicated
        l_safe = jnp.where(l > 0.0, l, jnp.float32(1.0))
        inv = pl.reciprocal(l_safe, approx=True)            # EUP slot
        inv = inv * (jnp.float32(2.0) - l_safe * inv)       # 1 Newton step
        inv = jnp.where(l > 0.0, inv, jnp.float32(0.0))     # empty segments -> zero rows
        att = (acc_scratch[...] * inv).astype(jnp.bfloat16) # plain elementwise, no expander
        out_ref[...] = (jnp.dot(att, wo_ref[...], preferred_element_type=jnp.float32)
                        + bo_ref[...])


@functools.partial(jax.jit, static_argnames=("block_q", "block_k"))
def mh_att(query, key, value, query_batch, key_value_batch, params,
           *, block_q=256, block_k=1024):
    n_q = query.shape[0]
    n_k = key.shape[0]

    # Guarantee >=2 tiles on the "parallel" Nq axis when n_q allows (keeps both v7x TCs busy),
    # and keep (8, 128) alignment.
    block_q = min(block_q, _round_up((max(n_q, 1) + 1) // 2, 8))
    block_k = min(block_k, _round_up(max(n_k, 1), 128))
    nq_pad = _round_up(n_q, block_q)
    nk_pad = _round_up(n_k, block_k)
    nq_t = nq_pad // block_q
    nk_t = nk_pad // block_k

    f32 = jnp.float32
    wq = params["wq"].astype(f32); bq = params["bq"].astype(f32)
    wk = params["wk"].astype(f32); bk = params["bk"].astype(f32)
    wv = params["wv"].astype(f32); bv = params["bv"].astype(f32)
    wo = params["wo"].astype(jnp.bfloat16)                  # bf16 MXU operand
    bo = params["bo"].astype(f32).reshape(1, OUT_DIM)

    # Hoisted projections: computed ONCE (not per query tile), scale folded into Q, stored
    # bf16 (MXU-native, half the HBM stream).  K is stored pre-transposed.
    qp = ((query.astype(f32) @ wq + bq) * f32(_SCALE)).astype(jnp.bfloat16)
    kp = (key.astype(f32) @ wk + bk).astype(jnp.bfloat16)
    vp = (value.astype(f32) @ wv + bv).astype(jnp.bfloat16)

    qp_pad = jnp.zeros((nq_pad, OUT_DIM), jnp.bfloat16).at[:n_q].set(qp)
    kpT_pad = jnp.zeros((OUT_DIM, nk_pad), jnp.bfloat16).at[:, :n_k].set(kp.T)
    vp_pad = jnp.zeros((nk_pad, OUT_DIM), jnp.bfloat16).at[:n_k].set(vp)
    # padded queries get batch -1, padded keys -2 -> never match anything
    qb_pad = jnp.full((nq_pad,), -1, jnp.int32).at[:n_q].set(query_batch.astype(jnp.int32))
    kb_pad = jnp.full((nk_pad,), -2, jnp.int32).at[:n_k].set(key_value_batch.astype(jnp.int32))

    # Block-sparse schedule: for each query tile, the (compacted) list of key tiles that share
    # at least one graph id, plus its length.  (Small demo sizes -> the dense comparison below
    # is cheap; for large graphs compute this from segment boundaries instead.)
    overlap = (qb_pad.reshape(nq_t, block_q)[:, :, None, None]
               == kb_pad.reshape(nk_t, block_k)[None, None, :, :]).any(axis=(1, 3))  # [nq_t, nk_t]
    nkc = jnp.sum(overlap, axis=1).astype(jnp.int32)                        # [nq_t]
    kmap = jnp.argsort(jnp.where(overlap, 0, 1), axis=1).astype(jnp.int32)  # overlapping first

    qb2 = qb_pad.reshape(nq_pad, 1)
    kb2 = kb_pad.reshape(1, nk_pad)

    def k_block(i, k, kmap_ref, nkc_ref):
        # clamp so steps past the last overlapping tile repeat the same block -> no re-DMA
        kk = jnp.maximum(jnp.minimum(k, nkc_ref[i] - 1), 0)
        return kmap_ref[i, kk]

    in_specs = [
        pl.BlockSpec((block_q, OUT_DIM), lambda i, k, km, nc: (i, 0)),               # q proj tile
        pl.BlockSpec((OUT_DIM, block_k), lambda i, k, km, nc: (0, k_block(i, k, km, nc))),  # k^T
        pl.BlockSpec((block_k, OUT_DIM), lambda i, k, km, nc: (k_block(i, k, km, nc), 0)),  # v
        pl.BlockSpec((block_q, 1), lambda i, k, km, nc: (i, 0)),                     # query_batch
        pl.BlockSpec((1, block_k), lambda i, k, km, nc: (0, k_block(i, k, km, nc))), # key batch
        pl.BlockSpec((OUT_DIM, OUT_DIM), lambda i, k, km, nc: (0, 0)),               # wo (resident)
        pl.BlockSpec((1, OUT_DIM), lambda i, k, km, nc: (0, 0)),                     # bo (resident)
    ]

    out = pl.pallas_call(
        _mh_att_kernel,
        out_shape=jax.ShapeDtypeStruct((nq_pad, OUT_DIM), jnp.float32),
        grid_spec=pltpu.PrefetchScalarGridSpec(
            num_scalar_prefetch=2,
            grid=(nq_t, nk_t),
            in_specs=in_specs,
            out_specs=pl.BlockSpec((block_q, OUT_DIM), lambda i, k, km, nc: (i, 0)),
            scratch_shapes=[
                pltpu.VMEM((block_q, OUT_DIM), jnp.float32),   # un-normalized attn accumulator
                pltpu.VMEM((block_q, OUT_DIM), jnp.float32),   # running max, lane-replicated/head
                pltpu.VMEM((block_q, OUT_DIM), jnp.float32),   # running denom, lane-replicated/head
            ],
        ),
        compiler_params=pltpu.CompilerParams(
            dimension_semantics=("parallel", "arbitrary"),
        ),
    )(kmap, nkc, qp_pad, kpT_pad, vp_pad, qb2, kb2, wo, bo)

    return out[:n_q]


def _reference(query, key, value, query_batch, key_value_batch, params):
    """Pure-JAX dense-masked f32 reference (matches the PyTorch module's semantics)."""
    qp = query @ params["wq"] + params["bq"]
    kp = key @ params["wk"] + params["bk"]
    vp = value @ params["wv"] + params["bv"]
    n_q = query.shape[0]
    qp = qp.reshape(n_q, N_ATT_HEADS, D_K)
    kp = kp.reshape(-1, N_ATT_HEADS, D_K)
    vp = vp.reshape(-1, N_ATT_HEADS, D_K)
    mask = query_batch[:, None] == key_value_batch[None, :]
    s = jnp.einsum("qhd,khd->hqk", qp, kp) / jnp.sqrt(jnp.float32(D_K))
    s = jnp.where(mask[None], s, -1e30)
    m = jnp.max(s, axis=-1, keepdims=True)
    p = jnp.where(mask[None], jnp.exp(s - m), 0.0)
    denom = jnp.sum(p, axis=-1, keepdims=True)
    att = p / jnp.where(denom > 0, denom, 1.0)
    att_out = jnp.einsum("hqk,khd->qhd", att, vp).reshape(n_q, OUT_DIM)
    return att_out @ params["wo"] + params["bo"]


def _init_params(key):
    ks = jax.random.split(key, 8)
    scale = 0.05
    return {
        "wq": scale * jax.random.normal(ks[0], (Q_DIM, OUT_DIM), jnp.float32),
        "bq": scale * jax.random.normal(ks[1], (OUT_DIM,), jnp.float32),
        "wk": scale * jax.random.normal(ks[2], (K_DIM, OUT_DIM), jnp.float32),
        "bk": scale * jax.random.normal(ks[3], (OUT_DIM,), jnp.float32),
        "wv": scale * jax.random.normal(ks[4], (V_DIM, OUT_DIM), jnp.float32),
        "bv": scale * jax.random.normal(ks[5], (OUT_DIM,), jnp.float32),
        "wo": scale * jax.random.normal(ks[6], (OUT_DIM, OUT_DIM), jnp.float32),
        "bo": scale * jax.random.normal(ks[7], (OUT_DIM,), jnp.float32),
    }


def _make_inputs(key, nodes_per_graph):
    k_q, k_k, k_v = jax.random.split(key, 3)
    n_graphs = len(nodes_per_graph)
    n_keys = int(sum(nodes_per_graph))
    query = jax.random.normal(k_q, (n_graphs, Q_DIM), jnp.float32)
    keys = jax.random.normal(k_k, (n_keys, K_DIM), jnp.float32)
    value = jax.random.normal(k_v, (n_keys, V_DIM), jnp.float32)
    query_batch = jnp.arange(n_graphs, dtype=jnp.int32)
    key_value_batch = jnp.repeat(jnp.arange(n_graphs, dtype=jnp.int32),
                                 jnp.asarray(nodes_per_graph, dtype=jnp.int32))
    return query, keys, value, query_batch, key_value_batch


if __name__ == "__main__":
    root = jax.random.PRNGKey(0)
    k_par, k_in1, k_in2 = jax.random.split(root, 3)
    params = _init_params(k_par)

    # bf16 MXU operands are a deliberate, slightly lossy change -> loosened tolerance
    ATOL = RTOL = 2e-2

    # Test 1: tiny graph batch (one query per graph, as in G_SphereNet sampling); single tile.
    q1, k1, v1, qb1, kb1 = _make_inputs(k_in1, [3, 1, 4, 2, 6])
    out1 = jax.block_until_ready(mh_att(q1, k1, v1, qb1, kb1, params))
    ref1 = _reference(q1, k1, v1, qb1, kb1, params)
    assert out1.shape == ref1.shape
    err1 = jnp.max(jnp.abs(out1 - ref1))
    assert jnp.allclose(out1, ref1, atol=ATOL, rtol=RTOL), f"test1 mismatch (max err {err1})"

    # Test 2: multi-tile grid (3 query tiles x 2 key tiles) exercising the block-sparse
    # segment skip and the clamped data-dependent index_maps.
    nodes2 = [(i % 7) + 2 for i in range(40)]               # 40 graphs, 195 keys
    q2, k2, v2, qb2, kb2 = _make_inputs(k_in2, nodes2)
    out2 = jax.block_until_ready(
        mh_att(q2, k2, v2, qb2, kb2, params, block_q=16, block_k=128))
    ref2 = _reference(q2, k2, v2, qb2, kb2, params)
    assert out2.shape == ref2.shape
    err2 = jnp.max(jnp.abs(out2 - ref2))
    assert jnp.allclose(out2, ref2, atol=ATOL, rtol=RTOL), f"test2 mismatch (max err {err2})"

    print("KERNEL_OK")
</pallas_src>

<mosaic_0001>
module attributes {stable_mosaic.version = 11 : i64} {
  func.func @_mh_att_kernel(%arg0: i32, %arg1: i32, %arg2: memref<1x1xi32, #tpu.memory_space<smem>>, %arg3: memref<1xi32, #tpu.memory_space<smem>>, %arg4: memref<8x128xbf16, #tpu.memory_space<vmem>>, %arg5: memref<128x128xbf16, #tpu.memory_space<vmem>>, %arg6: memref<128x128xbf16, #tpu.memory_space<vmem>>, %arg7: memref<8x1xi32, #tpu.memory_space<vmem>>, %arg8: memref<1x128xi32, #tpu.memory_space<vmem>>, %arg9: memref<128x128xbf16, #tpu.memory_space<vmem>>, %arg10: memref<1x128xf32, #tpu.memory_space<vmem>>, %arg11: memref<8x128xf32, #tpu.memory_space<vmem>>, %arg12: memref<8x128xf32, #tpu.memory_space<vmem>>, %arg13: memref<8x128xf32, #tpu.memory_space<vmem>>, %arg14: memref<8x128xf32, #tpu.memory_space<vmem>>) attributes {dimension_semantics = [#tpu.dimension_semantics<parallel>, #tpu.dimension_semantics<arbitrary>], iteration_bounds = array<i64: 1, 1>, scalar_prefetch = 2 : i64, scratch_operands = 3 : i64, tpu.core_type = #tpu.core_type<tc>, window_params = [{transform_indices = @transform_0, window_bounds = array<i64: 8, 128>}, {transform_indices = @transform_1, window_bounds = array<i64: 128, 128>}, {transform_indices = @transform_2, window_bounds = array<i64: 128, 128>}, {transform_indices = @transform_3, window_bounds = array<i64: 8, 1>}, {transform_indices = @transform_4, window_bounds = array<i64: 1, 128>}, {pipeline_mode = #tpu.pipeline_mode<synchronous>, transform_indices = @transform_5, window_bounds = array<i64: 128, 128>}, {pipeline_mode = #tpu.pipeline_mode<synchronous>, transform_indices = @transform_6, window_bounds = array<i64: 1, 128>}, {transform_indices = @transform_7, window_bounds = array<i64: 8, 128>}]} {
    %c0_i32 = arith.constant 0 : i32
    %0 = arith.cmpi eq, %arg1, %c0_i32 : i32
    %1 = arith.extui %0 : i1 to i32
    %c0_i32_0 = arith.constant 0 : i32
    %2 = arith.cmpi ne, %1, %c0_i32_0 : i32
    scf.if %2 {
      %cst = arith.constant -1.000000e+30 : f32
      %11 = vector.broadcast %cst : f32 to vector<8x128xf32>
      %c0 = arith.constant 0 : index
      %c0_4 = arith.constant 0 : index
      %12 = vector.load %arg13[%c0, %c0_4] : memref<8x128xf32, #tpu.memory_space<vmem>>, vector<8x128xf32>
      tpu.vector_store %arg13[%c0, %c0_4], %11 {strides = array<i32>} : memref<8x128xf32, #tpu.memory_space<vmem>>, vector<8x128xf32>,
      %cst_5 = arith.constant 0.000000e+00 : f32
      %13 = vector.broadcast %cst_5 : f32 to vector<8x128xf32>
      %c0_6 = arith.constant 0 : index
      %c0_7 = arith.constant 0 : index
      %14 = vector.load %arg14[%c0_6, %c0_7] : memref<8x128xf32, #tpu.memory_space<vmem>>, vector<8x128xf32>
      tpu.vector_store %arg14[%c0_6, %c0_7], %13 {strides = array<i32>} : memref<8x128xf32, #tpu.memory_space<vmem>>, vector<8x128xf32>,
      %cst_8 = arith.constant 0.000000e+00 : f32
      %15 = vector.broadcast %cst_8 : f32 to vector<8x128xf32>
      %c0_9 = arith.constant 0 : index
      %c0_10 = arith.constant 0 : index
      %16 = vector.load %arg12[%c0_9, %c0_10] : memref<8x128xf32, #tpu.memory_space<vmem>>, vector<8x128xf32>
      tpu.vector_store %arg12[%c0_9, %c0_10], %15 {strides = array<i32>} : memref<8x128xf32, #tpu.memory_space<vmem>>, vector<8x128xf32>,
    } else {
    }
    %3 = arith.index_cast %arg0 : i32 to index
    %4 = memref.load %arg3[%3] : memref<1xi32, #tpu.memory_space<smem>>
    %5 = arith.cmpi slt, %arg1, %4 : i32
    %6 = arith.extui %5 : i1 to i32
    %c0_i32_1 = arith.constant 0 : i32
    %7 = arith.cmpi ne, %6, %c0_i32_1 : i32
    scf.if %7 {
      %c0 = arith.constant 0 : index
      %c0_4 = arith.constant 0 : index
      %11 = vector.load %arg7[%c0, %c0_4] : memref<8x1xi32, #tpu.memory_space<vmem>>, vector<8x1xi32>
      %c0_5 = arith.constant 0 : index
      %c0_6 = arith.constant 0 : index
      %12 = vector.load %arg8[%c0_5, %c0_6] : memref<1x128xi32, #tpu.memory_space<vmem>>, vector<1x128xi32>
      %13 = vector.broadcast %11 : vector<8x1xi32> to vector<8x128xi32>
      %14 = vector.broadcast %12 : vector<1x128xi32> to vector<8x128xi32>
      %15 = arith.cmpi eq, %13, %14 : vector<8x128xi32>
      %c0_7 = arith.constant 0 : index
      %c0_8 = arith.constant 0 : index
      %16 = vector.load %arg4[%c0_7, %c0_8] : memref<8x128xbf16, #tpu.memory_space<vmem>>, vector<8x128xbf16>
      %c0_9 = arith.constant 0 : index
      %c0_10 = arith.constant 0 : index
      %17 = vector.load %arg5[%c0_9, %c0_10] : memref<128x128xbf16, #tpu.memory_space<vmem>>, vector<128x128xbf16>
      %c0_11 = arith.constant 0 : index
      %c0_12 = arith.constant 0 : index
      %18 = vector.load %arg6[%c0_11, %c0_12] : memref<128x128xbf16, #tpu.memory_space<vmem>>, vector<128x128xbf16>
      %c0_13 = arith.constant 0 : index
      %c0_14 = arith.constant 0 : index
      %19 = vector.load %arg13[%c0_13, %c0_14] : memref<8x128xf32, #tpu.memory_space<vmem>>, vector<8x128xf32>
      %c0_15 = arith.constant 0 : index
      %c0_16 = arith.constant 0 : index
      %20 = vector.load %arg14[%c0_15, %c0_16] : memref<8x128xf32, #tpu.memory_space<vmem>>, vector<8x128xf32>
      %c0_17 = arith.constant 0 : index
      %c0_18 = arith.constant 0 : index
      %21 = vector.load %arg12[%c0_17, %c0_18] : memref<8x128xf32, #tpu.memory_space<vmem>>, vector<8x128xf32>
      %22 = vector.extract_strided_slice %16 {offsets = [0, 0], sizes = [8, 32], strides = [1, 1]} : vector<8x128xbf16> to vector<8x32xbf16>
      %23 = vector.extract_strided_slice %17 {offsets = [0, 0], sizes = [32, 128], strides = [1, 1]} : vector<128x128xbf16> to vector<32x128xbf16>
      %cst = arith.constant dense<0.000000e+00> : vector<8x128xf32>
      %24 = tpu.matmul %22, %23, %cst {dimension_numbers = #tpu.dot_dimension_numbers<[1], [0], [0], [1], [0, 0, 1, 1], [], []>} : vector<8x32xbf16>, vector<32x128xbf16>, vector<8x128xf32> -> vector<8x128xf32>
      %cst_19 = arith.constant -1.000000e+30 : f32
      %25 = vector.broadcast %cst_19 : f32 to vector<8x128xf32>
      %26 = arith.select %15, %24, %25 : vector<8x128xi1>, vector<8x128xf32>
      %27 = vector.extract_strided_slice %19 {offsets = [0, 0], sizes = [8, 32], strides = [1, 1]} : vector<8x128xf32> to vector<8x32xf32>
      %cst_20 = arith.constant dense<0xFF800000> : vector<8xf32>
      %28 = vector.multi_reduction <maximumf>, %26, %cst_20 [1] : vector<8x128xf32> to vector<8xf32>
      %29 = vector.shape_cast %28 : vector<8xf32> to vector<8x1xf32>
      %30 = vector.broadcast %29 : vector<8x1xf32> to vector<8x32xf32>
      %31 = arith.maximumf %27, %30 : vector<8x32xf32>
      %32 = arith.subf %27, %31 : vector<8x32xf32>
      %33 = math.exp %32 : vector<8x32xf32>
      %34 = vector.extract_strided_slice %31 {offsets = [0, 0], sizes = [8, 1], strides = [1, 1]} : vector<8x32xf32> to vector<8x1xf32>
      %35 = vector.broadcast %34 : vector<8x1xf32> to vector<8x128xf32>
      %36 = arith.subf %26, %35 : vector<8x128xf32>
      %37 = math.exp %36 : vector<8x128xf32>
      %cst_21 = arith.constant 0.000000e+00 : f32
      %38 = vector.broadcast %cst_21 : f32 to vector<8x128xf32>
      %39 = arith.select %15, %37, %38 : vector<8x128xi1>, vector<8x128xf32>
      %40 = vector.extract_strided_slice %20 {offsets = [0, 0], sizes = [8, 32], strides = [1, 1]} : vector<8x128xf32> to vector<8x32xf32>
      %41 = arith.mulf %33, %40 : vector<8x32xf32>
      %cst_22 = arith.constant dense<0.000000e+00> : vector<8xf32>
      %42 = vector.multi_reduction <add>, %39, %cst_22 [1] : vector<8x128xf32> to vector<8xf32>
      %43 = vector.shape_cast %42 : vector<8xf32> to vector<8x1xf32>
      %44 = vector.broadcast %43 : vector<8x1xf32> to vector<8x32xf32>
      %45 = arith.addf %41, %44 : vector<8x32xf32>
      %46 = vector.extract_strided_slice %21 {offsets = [0, 0], sizes = [8, 32], strides = [1, 1]} : vector<8x128xf32> to vector<8x32xf32>
      %47 = arith.mulf %33, %46 : vector<8x32xf32>
      %48 = arith.truncf %39 : vector<8x128xf32> to vector<8x128xbf16>
      %49 = vector.extract_strided_slice %18 {offsets = [0, 0], sizes = [128, 32], strides = [1, 1]} : vector<128x128xbf16> to vector<128x32xbf16>
      %cst_23 = arith.constant dense<0.000000e+00> : vector<8x32xf32>
      %50 = tpu.matmul %48, %49, %cst_23 {dimension_numbers = #tpu.dot_dimension_numbers<[1], [0], [0], [1], [0, 0, 1, 1], [], []>} : vector<8x128xbf16>, vector<128x32xbf16>, vector<8x32xf32> -> vector<8x32xf32>
      %51 = arith.addf %47, %50 : vector<8x32xf32>
      %52 = vector.extract_strided_slice %16 {offsets = [0, 32], sizes = [8, 32], strides = [1, 1]} : vector<8x128xbf16> to vector<8x32xbf16>
      %53 = vector.extract_strided_slice %17 {offsets = [32, 0], sizes = [32, 128], strides = [1, 1]} : vector<128x128xbf16> to vector<32x128xbf16>
      %cst_24 = arith.constant dense<0.000000e+00> : vector<8x128xf32>
      %54 = tpu.matmul %52, %53, %cst_24 {dimension_numbers = #tpu.dot_dimension_numbers<[1], [0], [0], [1], [0, 0, 1, 1], [], []>} : vector<8x32xbf16>, vector<32x128xbf16>, vector<8x128xf32> -> vector<8x128xf32>
      %cst_25 = arith.constant -1.000000e+30 : f32
      %55 = vector.broadcast %cst_25 : f32 to vector<8x128xf32>
      %56 = arith.select %15, %54, %55 : vector<8x128xi1>, vector<8x128xf32>
      %57 = vector.extract_strided_slice %19 {offsets = [0, 32], sizes = [8, 32], strides = [1, 1]} : vector<8x128xf32> to vector<8x32xf32>
      %cst_26 = arith.constant dense<0xFF800000> : vector<8xf32>
      %58 = vector.multi_reduction <maximumf>, %56, %cst_26 [1] : vector<8x128xf32> to vector<8xf32>
      %59 = vector.shape_cast %58 : vector<8xf32> to vector<8x1xf32>
      %60 = vector.broadcast %59 : vector<8x1xf32> to vector<8x32xf32>
      %61 = arith.maximumf %57, %60 : vector<8x32xf32>
      %62 = arith.subf %57, %61 : vector<8x32xf32>
      %63 = math.exp %62 : vector<8x32xf32>
      %64 = vector.extract_strided_slice %61 {offsets = [0, 0], sizes = [8, 1], strides = [1, 1]} : vector<8x32xf32> to vector<8x1xf32>
      %65 = vector.broadcast %64 : vector<8x1xf32> to vector<8x128xf32>
      %66 = arith.subf %56, %65 : vector<8x128xf32>
      %67 = math.exp %66 : vector<8x128xf32>
      %cst_27 = arith.constant 0.000000e+00 : f32
      %68 = vector.broadcast %cst_27 : f32 to vector<8x128xf32>
      %69 = arith.select %15, %67, %68 : vector<8x128xi1>, vector<8x128xf32>
      %70 = vector.extract_strided_slice %20 {offsets = [0, 32], sizes = [8, 32], strides = [1, 1]} : vector<8x128xf32> to vector<8x32xf32>
      %71 = arith.mulf %63, %70 : vector<8x32xf32>
      %cst_28 = arith.constant dense<0.000000e+00> : vector<8xf32>
      %72 = vector.multi_reduction <add>, %69, %cst_28 [1] : vector<8x128xf32> to vector<8xf32>
      %73 = vector.shape_cast %72 : vector<8xf32> to vector<8x1xf32>
      %74 = vector.broadcast %73 : vector<8x1xf32> to vector<8x32xf32>
      %75 = arith.addf %71, %74 : vector<8x32xf32>
      %76 = vector.extract_strided_slice %21 {offsets = [0, 32], sizes = [8, 32], strides = [1, 1]} : vector<8x128xf32> to vector<8x32xf32>
      %77 = arith.mulf %63, %76 : vector<8x32xf32>
      %78 = arith.truncf %69 : vector<8x128xf32> to vector<8x128xbf16>
      %79 = vector.extract_strided_slice %18 {offsets = [0, 32], sizes = [128, 32], strides = [1, 1]} : vector<128x128xbf16> to vector<128x32xbf16>
      %cst_29 = arith.constant dense<0.000000e+00> : vector<8x32xf32>
      %80 = tpu.matmul %78, %79, %cst_29 {dimension_numbers = #tpu.dot_dimension_numbers<[1], [0], [0], [1], [0, 0, 1, 1], [], []>} : vector<8x128xbf16>, vector<128x32xbf16>, vector<8x32xf32> -> vector<8x32xf32>
      %81 = arith.addf %77, %80 : vector<8x32xf32>
      %82 = vector.extract_strided_slice %16 {offsets = [0, 64], sizes = [8, 32], strides = [1, 1]} : vector<8x128xbf16> to vector<8x32xbf16>
      %83 = vector.extract_strided_slice %17 {offsets = [64, 0], sizes = [32, 128], strides = [1, 1]} : vector<128x128xbf16> to vector<32x128xbf16>
      %cst_30 = arith.constant dense<0.000000e+00> : vector<8x128xf32>
      %84 = tpu.matmul %82, %83, %cst_30 {dimension_numbers = #tpu.dot_dimension_numbers<[1], [0], [0], [1], [0, 0, 1, 1], [], []>} : vector<8x32xbf16>, vector<32x128xbf16>, vector<8x128xf32> -> vector<8x128xf32>
      %cst_31 = arith.constant -1.000000e+30 : f32
      %85 = vector.broadcast %cst_31 : f32 to vector<8x128xf32>
      %86 = arith.select %15, %84, %85 : vector<8x128xi1>, vector<8x128xf32>
      %87 = vector.extract_strided_slice %19 {offsets = [0, 64], sizes = [8, 32], strides = [1, 1]} : vector<8x128xf32> to vector<8x32xf32>
      %cst_32 = arith.constant dense<0xFF800000> : vector<8xf32>
      %88 = vector.multi_reduction <maximumf>, %86, %cst_32 [1] : vector<8x128xf32> to vector<8xf32>
      %89 = vector.shape_cast %88 : vector<8xf32> to vector<8x1xf32>
      %90 = vector.broadcast %89 : vector<8x1xf32> to vector<8x32xf32>
      %91 = arith.maximumf %87, %90 : vector<8x32xf32>
      %92 = arith.subf %87, %91 : vector<8x32xf32>
      %93 = math.exp %92 : vector<8x32xf32>
      %94 = vector.extract_strided_slice %91 {offsets = [0, 0], sizes = [8, 1], strides = [1, 1]} : vector<8x32xf32> to vector<8x1xf32>
      %95 = vector.broadcast %94 : vector<8x1xf32> to vector<8x128xf32>
      %96 = arith.subf %86, %95 : vector<8x128xf32>
      %97 = math.exp %96 : vector<8x128xf32>
      %cst_33 = arith.constant 0.000000e+00 : f32
      %98 = vector.broadcast %cst_33 : f32 to vector<8x128xf32>
      %99 = arith.select %15, %97, %98 : vector<8x128xi1>, vector<8x128xf32>
      %100 = vector.extract_strided_slice %20 {offsets = [0, 64], sizes = [8, 32], strides = [1, 1]} : vector<8x128xf32> to vector<8x32xf32>
      %101 = arith.mulf %93, %100 : vector<8x32xf32>
      %cst_34 = arith.constant dense<0.000000e+00> : vector<8xf32>
      %102 = vector.multi_reduction <add>, %99, %cst_34 [1] : vector<8x128xf32> to vector<8xf32>
      %103 = vector.shape_cast %102 : vector<8xf32> to vector<8x1xf32>
      %104 = vector.broadcast %103 : vector<8x1xf32> to vector<8x32xf32>
      %105 = arith.addf %101, %104 : vector<8x32xf32>
      %106 = vector.extract_strided_slice %21 {offsets = [0, 64], sizes = [8, 32], strides = [1, 1]} : vector<8x128xf32> to vector<8x32xf32>
      %107 = arith.mulf %93, %106 : vector<8x32xf32>
      %108 = arith.truncf %99 : vector<8x128xf32> to vector<8x128xbf16>
      %109 = vector.extract_strided_slice %18 {offsets = [0, 64], sizes = [128, 32], strides = [1, 1]} : vector<128x128xbf16> to vector<128x32xbf16>
      %cst_35 = arith.constant dense<0.000000e+00> : vector<8x32xf32>
      %110 = tpu.matmul %108, %109, %cst_35 {dimension_numbers = #tpu.dot_dimension_numbers<[1], [0], [0], [1], [0, 0, 1, 1], [], []>} : vector<8x128xbf16>, vector<128x32xbf16>, vector<8x32xf32> -> vector<8x32xf32>
      %111 = arith.addf %107, %110 : vector<8x32xf32>
      %112 = vector.extract_strided_slice %16 {offsets = [0, 96], sizes = [8, 32], strides = [1, 1]} : vector<8x128xbf16> to vector<8x32xbf16>
      %113 = vector.extract_strided_slice %17 {offsets = [96, 0], sizes = [32, 128], strides = [1, 1]} : vector<128x128xbf16> to vector<32x128xbf16>
      %cst_36 = arith.constant dense<0.000000e+00> : vector<8x128xf32>
      %114 = tpu.matmul %112, %113, %cst_36 {dimension_numbers = #tpu.dot_dimension_numbers<[1], [0], [0], [1], [0, 0, 1, 1], [], []>} : vector<8x32xbf16>, vector<32x128xbf16>, vector<8x128xf32> -> vector<8x128xf32>
      %cst_37 = arith.constant -1.000000e+30 : f32
      %115 = vector.broadcast %cst_37 : f32 to vector<8x128xf32>
      %116 = arith.select %15, %114, %115 : vector<8x128xi1>, vector<8x128xf32>
      %117 = vector.extract_strided_slice %19 {offsets = [0, 96], sizes = [8, 32], strides = [1, 1]} : vector<8x128xf32> to vector<8x32xf32>
      %cst_38 = arith.constant dense<0xFF800000> : vector<8xf32>
      %118 = vector.multi_reduction <maximumf>, %116, %cst_38 [1] : vector<8x128xf32> to vector<8xf32>
      %119 = vector.shape_cast %118 : vector<8xf32> to vector<8x1xf32>
      %120 = vector.broadcast %119 : vector<8x1xf32> to vector<8x32xf32>
      %121 = arith.maximumf %117, %120 : vector<8x32xf32>
      %122 = arith.subf %117, %121 : vector<8x32xf32>
      %123 = math.exp %122 : vector<8x32xf32>
      %124 = vector.extract_strided_slice %121 {offsets = [0, 0], sizes = [8, 1], strides = [1, 1]} : vector<8x32xf32> to vector<8x1xf32>
      %125 = vector.broadcast %124 : vector<8x1xf32> to vector<8x128xf32>
      %126 = arith.subf %116, %125 : vector<8x128xf32>
      %127 = math.exp %126 : vector<8x128xf32>
      %cst_39 = arith.constant 0.000000e+00 : f32
      %128 = vector.broadcast %cst_39 : f32 to vector<8x128xf32>
      %129 = arith.select %15, %127, %128 : vector<8x128xi1>, vector<8x128xf32>
      %130 = vector.extract_strided_slice %20 {offsets = [0, 96], sizes = [8, 32], strides = [1, 1]} : vector<8x128xf32> to vector<8x32xf32>
      %131 = arith.mulf %123, %130 : vector<8x32xf32>
      %cst_40 = arith.constant dense<0.000000e+00> : vector<8xf32>
      %132 = vector.multi_reduction <add>, %129, %cst_40 [1] : vector<8x128xf32> to vector<8xf32>
      %133 = vector.shape_cast %132 : vector<8xf32> to vector<8x1xf32>
      %134 = vector.broadcast %133 : vector<8x1xf32> to vector<8x32xf32>
      %135 = arith.addf %131, %134 : vector<8x32xf32>
      %136 = vector.extract_strided_slice %21 {offsets = [0, 96], sizes = [8, 32], strides = [1, 1]} : vector<8x128xf32> to vector<8x32xf32>
      %137 = arith.mulf %123, %136 : vector<8x32xf32>
      %138 = arith.truncf %129 : vector<8x128xf32> to vector<8x128xbf16>
      %139 = vector.extract_strided_slice %18 {offsets = [0, 96], sizes = [128, 32], strides = [1, 1]} : vector<128x128xbf16> to vector<128x32xbf16>
      %cst_41 = arith.constant dense<0.000000e+00> : vector<8x32xf32>
      %140 = tpu.matmul %138, %139, %cst_41 {dimension_numbers = #tpu.dot_dimension_numbers<[1], [0], [0], [1], [0, 0, 1, 1], [], []>} : vector<8x128xbf16>, vector<128x32xbf16>, vector<8x32xf32> -> vector<8x32xf32>
      %141 = arith.addf %137, %140 : vector<8x32xf32>
      %142 = tpu.concatenate %51, %81, %111, %141 in 1 : vector<8x32xf32>, vector<8x32xf32>, vector<8x32xf32>, vector<8x32xf32> -> vector<8x128xf32>
      %c0_42 = arith.constant 0 : index
      %c0_43 = arith.constant 0 : index
      %143 = vector.load %arg12[%c0_42, %c0_43] : memref<8x128xf32, #tpu.memory_space<vmem>>, vector<8x128xf32>
      tpu.vector_store %arg12[%c0_42, %c0_43], %142 {strides = array<i32>} : memref<8x128xf32, #tpu.memory_space<vmem>>, vector<8x128xf32>,
      %144 = tpu.concatenate %31, %61, %91, %121 in 1 : vector<8x32xf32>, vector<8x32xf32>, vector<8x32xf32>, vector<8x32xf32> -> vector<8x128xf32>
      %c0_44 = arith.constant 0 : index
      %c0_45 = arith.constant 0 : index
      %145 = vector.load %arg13[%c0_44, %c0_45] : memref<8x128xf32, #tpu.memory_space<vmem>>, vector<8x128xf32>
      tpu.vector_store %arg13[%c0_44, %c0_45], %144 {strides = array<i32>} : memref<8x128xf32, #tpu.memory_space<vmem>>, vector<8x128xf32>,
      %146 = tpu.concatenate %45, %75, %105, %135 in 1 : vector<8x32xf32>, vector<8x32xf32>, vector<8x32xf32>, vector<8x32xf32> -> vector<8x128xf32>
      %c0_46 = arith.constant 0 : index
      %c0_47 = arith.constant 0 : index
      %147 = vector.load %arg14[%c0_46, %c0_47] : memref<8x128xf32, #tpu.memory_space<vmem>>, vector<8x128xf32>
      tpu.vector_store %arg14[%c0_46, %c0_47], %146 {strides = array<i32>} : memref<8x128xf32, #tpu.memory_space<vmem>>, vector<8x128xf32>,
    } else {
    }
    %c0_i32_2 = arith.constant 0 : i32
    %8 = arith.cmpi eq, %arg1, %c0_i32_2 : i32
    %9 = arith.extui %8 : i1 to i32
    %c0_i32_3 = arith.constant 0 : i32
    %10 = arith.cmpi ne, %9, %c0_i32_3 : i32
    scf.if %10 {
      %c0 = arith.constant 0 : index
      %c0_4 = arith.constant 0 : index
      %11 = vector.load %arg14[%c0, %c0_4] : memref<8x128xf32, #tpu.memory_space<vmem>>, vector<8x128xf32>
      %cst = arith.constant 0.000000e+00 : f32
      %12 = vector.broadcast %cst : f32 to vector<8x128xf32>
      %13 = arith.cmpf ogt, %11, %12 : vector<8x128xf32>
      %cst_5 = arith.constant 1.000000e+00 : f32
      %14 = vector.broadcast %cst_5 : f32 to vector<8x128xf32>
      %15 = arith.select %13, %11, %14 : vector<8x128xi1>, vector<8x128xf32>
      %16 = tpu.reciprocal %15 {approx = true} : vector<8x128xf32> -> vector<8x128xf32>
      %17 = arith.mulf %15, %16 : vector<8x128xf32>
      %cst_6 = arith.constant 2.000000e+00 : f32
      %18 = vector.broadcast %cst_6 : f32 to vector<8x128xf32>
      %19 = arith.subf %18, %17 : vector<8x128xf32>
      %20 = arith.mulf %16, %19 : vector<8x128xf32>
      %cst_7 = arith.constant 0.000000e+00 : f32
      %21 = vector.broadcast %cst_7 : f32 to vector<8x128xf32>
      %22 = arith.cmpf ogt, %11, %21 : vector<8x128xf32>
      %cst_8 = arith.constant 0.000000e+00 : f32
      %23 = vector.broadcast %cst_8 : f32 to vector<8x128xf32>
      %24 = arith.select %22, %20, %23 : vector<8x128xi1>, vector<8x128xf32>
      %c0_9 = arith.constant 0 : index
      %c0_10 = arith.constant 0 : index
      %25 = vector.load %arg12[%c0_9, %c0_10] : memref<8x128xf32, #tpu.memory_space<vmem>>, vector<8x128xf32>
      %26 = arith.mulf %25, %24 : vector<8x128xf32>
      %27 = arith.truncf %26 : vector<8x128xf32> to vector<8x128xbf16>
      %c0_11 = arith.constant 0 : index
      %c0_12 = arith.constant 0 : index
      %28 = vector.load %arg9[%c0_11, %c0_12] : memref<128x128xbf16, #tpu.memory_space<vmem>>, vector<128x128xbf16>
      %cst_13 = arith.constant dense<0.000000e+00> : vector<8x128xf32>
      %29 = tpu.matmul %27, %28, %cst_13 {dimension_numbers = #tpu.dot_dimension_numbers<[1], [0], [0], [1], [0, 0, 1, 1], [], []>} : vector<8x128xbf16>, vector<128x128xbf16>, vector<8x128xf32> -> vector<8x128xf32>
      %c0_14 = arith.constant 0 : index
      %c0_15 = arith.constant 0 : index
      %30 = vector.load %arg10[%c0_14, %c0_15] : memref<1x128xf32, #tpu.memory_space<vmem>>, vector<1x128xf32>
      %31 = vector.broadcast %30 : vector<1x128xf32> to vector<8x128xf32>
      %32 = arith.addf %29, %31 : vector<8x128xf32>
      %c0_16 = arith.constant 0 : index
      %c0_17 = arith.constant 0 : index
      %33 = vector.load %arg11[%c0_16, %c0_17] : memref<8x128xf32, #tpu.memory_space<vmem>>, vector<8x128xf32>
      tpu.vector_store %arg11[%c0_16, %c0_17], %32 {strides = array<i32>} : memref<8x128xf32, #tpu.memory_space<vmem>>, vector<8x128xf32>,
    } else {
    }
    return
  }
  func.func @transform_0(%arg0: i32, %arg1: i32, %arg2: memref<1x1xi32, #tpu.memory_space<smem>>, %arg3: memref<1xi32, #tpu.memory_space<smem>>) -> (i32, i32) {
    %c0_i32 = arith.constant 0 : i32
    %c0_i32_0 = arith.constant 0 : i32
    return %arg0, %c0_i32 : i32, i32
  }
  func.func @transform_1(%arg0: i32, %arg1: i32, %arg2: memref<1x1xi32, #tpu.memory_space<smem>>, %arg3: memref<1xi32, #tpu.memory_space<smem>>) -> (i32, i32) {
    %0 = arith.index_cast %arg0 : i32 to index
    %1 = memref.load %arg3[%0] : memref<1xi32, #tpu.memory_space<smem>>
    %c1_i32 = arith.constant 1 : i32
    %2 = arith.subi %1, %c1_i32 : i32
    %3 = arith.minsi %arg1, %2 : i32
    %c0_i32 = arith.constant 0 : i32
    %4 = arith.maxsi %3, %c0_i32 : i32
    %5 = arith.index_cast %arg0 : i32 to index
    %6 = arith.index_cast %4 : i32 to index
    %7 = memref.load %arg2[%5, %6] : memref<1x1xi32, #tpu.memory_space<smem>>
    %c0_i32_0 = arith.constant 0 : i32
    %c0_i32_1 = arith.constant 0 : i32
    return %c0_i32_0, %7 : i32, i32
  }
  func.func @transform_2(%arg0: i32, %arg1: i32, %arg2: memref<1x1xi32, #tpu.memory_space<smem>>, %arg3: memref<1xi32, #tpu.memory_space<smem>>) -> (i32, i32) {
    %0 = arith.index_cast %arg0 : i32 to index
    %1 = memref.load %arg3[%0] : memref<1xi32, #tpu.memory_space<smem>>
    %c1_i32 = arith.constant 1 : i32
    %2 = arith.subi %1, %c1_i32 : i32
    %3 = arith.minsi %arg1, %2 : i32
    %c0_i32 = arith.constant 0 : i32
    %4 = arith.maxsi %3, %c0_i32 : i32
    %5 = arith.index_cast %arg0 : i32 to index
    %6 = arith.index_cast %4 : i32 to index
    %7 = memref.load %arg2[%5, %6] : memref<1x1xi32, #tpu.memory_space<smem>>
    %c0_i32_0 = arith.constant 0 : i32
    %c0_i32_1 = arith.constant 0 : i32
    return %7, %c0_i32_0 : i32, i32
  }
  func.func @transform_3(%arg0: i32, %arg1: i32, %arg2: memref<1x1xi32, #tpu.memory_space<smem>>, %arg3: memref<1xi32, #tpu.memory_space<smem>>) -> (i32, i32) {
    %c0_i32 = arith.constant 0 : i32
    %c0_i32_0 = arith.constant 0 : i32
    return %arg0, %c0_i32 : i32, i32
  }
  func.func @transform_4(%arg0: i32, %arg1: i32, %arg2: memref<1x1xi32, #tpu.memory_space<smem>>, %arg3: memref<1xi32, #tpu.memory_space<smem>>) -> (i32, i32) {
    %0 = arith.index_cast %arg0 : i32 to index
    %1 = memref.load %arg3[%0] : memref<1xi32, #tpu.memory_space<smem>>
    %c1_i32 = arith.constant 1 : i32
    %2 = arith.subi %1, %c1_i32 : i32
    %3 = arith.minsi %arg1, %2 : i32
    %c0_i32 = arith.constant 0 : i32
    %4 = arith.maxsi %3, %c0_i32 : i32
    %5 = arith.index_cast %arg0 : i32 to index
    %6 = arith.index_cast %4 : i32 to index
    %7 = memref.load %arg2[%5, %6] : memref<1x1xi32, #tpu.memory_space<smem>>
    %c0_i32_0 = arith.constant 0 : i32
    %c0_i32_1 = arith.constant 0 : i32
    return %c0_i32_0, %7 : i32, i32
  }
  func.func @transform_5(%arg0: i32, %arg1: i32, %arg2: memref<1x1xi32, #tpu.memory_space<smem>>, %arg3: memref<1xi32, #tpu.memory_space<smem>>) -> (i32, i32) {
    %c0_i32 = arith.constant 0 : i32
    %c0_i32_0 = arith.constant 0 : i32
    %c0_i32_1 = arith.constant 0 : i32
    return %c0_i32, %c0_i32_0 : i32, i32
  }
  func.func @transform_6(%arg0: i32, %arg1: i32, %arg2: memref<1x1xi32, #tpu.memory_space<smem>>, %arg3: memref<1xi32, #tpu.memory_space<smem>>) -> (i32, i32) {
    %c0_i32 = arith.constant 0 : i32
    %c0_i32_0 = arith.constant 0 : i32
    %c0_i32_1 = arith.constant 0 : i32
    return %c0_i32, %c0_i32_0 : i32, i32
  }
  func.func @transform_7(%arg0: i32, %arg1: i32, %arg2: memref<1x1xi32, #tpu.memory_space<smem>>, %arg3: memref<1xi32, #tpu.memory_space<smem>>) -> (i32, i32) {
    %c0_i32 = arith.constant 0 : i32
    %c0_i32_0 = arith.constant 0 : i32
    return %arg0, %c0_i32 : i32, i32
  }
}

</mosaic_0001>

<llo_original>
// kernel: mh_att.1
$region0: #{mh_att.1}
  #allocation0 [shape = 'u32[]', space=smem, size = 0x4, offset = 0x4, fixed_abs, tag = 'smem constant byte address 0x4 - core index']
  #allocation1 [shape = 'u32[72,128]{1,0:T(1,128)}', space=vmem, size = 0x9000, scoped, tag = 'internal scratch']
  #allocation2 [shape = 'f32[8,128]{1,0:T(8,128)}', space=vmem, size = 0x1000, scoped, tag = 'scratch operand']
  #allocation3 [shape = 'f32[8,128]{1,0:T(8,128)}', space=vmem, size = 0x1000, scoped, tag = 'scratch operand']
  #allocation4 [shape = 'f32[8,128]{1,0:T(8,128)}', space=vmem, size = 0x1000, scoped, tag = 'scratch operand']
  #allocation5 [shape = 's32[1]{0}', space=sflag, size = 0x4, scoped, tag = 'scoped memory for mh_att.1']
  #allocation6 [shape = 's32[1,1]{1,0:T(1,128)S(6)}', space=smem, size = 0x200, scoped, tag = 'prefetched SMEM operand 0']
  #allocation7 [shape = 's32[1]{0:T(128)S(6)}', space=smem, size = 0x200, scoped, tag = 'prefetched SMEM operand 1']
  %s0 = inlined_call_operand.<no memory space> [shape: s32[1,1], index: 0, kind: input, shape index: {}]
  %s1 = inlined_call_operand.<no memory space> [shape: s32[1], index: 1, kind: input, shape index: {}]
  %s2 = inlined_call_operand.vmem [shape: bf16[8,128], index: 2, kind: input, shape index: {}]
  %s3 = inlined_call_operand.vmem [shape: bf16[128,128], index: 3, kind: input, shape index: {}]
  %s4 = inlined_call_operand.vmem [shape: bf16[128,128], index: 4, kind: input, shape index: {}]
  %s5 = inlined_call_operand.vmem [shape: s32[8,1], index: 5, kind: input, shape index: {}]
  %s6 = inlined_call_operand.vmem [shape: s32[1,128], index: 6, kind: input, shape index: {}]
  %s7 = inlined_call_operand.vmem [shape: bf16[128,128], index: 7, kind: input, shape index: {}]
  %s8 = inlined_call_operand.vmem [shape: f32[1,128], index: 8, kind: input, shape index: {}]
  %s9 = inlined_call_operand.hbm [shape: f32[8,128], index: 9, kind: output, shape index: {}]
  %s10 = sld [smem:[#allocation0]]
  $region50: #{mh_att.1} parent=0
    _
  %s12 = ssub.s32 1, %s10
  %s13 = scalar_select 0, %s12, %s10
  %14 = sst [smem:[#allocation6]] %s0
  %15 = sst [smem:[#allocation7]] %s1
  $region1: #{mh_att.1} parent=0
    #allocation8 [shape = 'u8[4096]{0}', space=vmem, size = 0x1000, scoped, tag = 'output window, operand 0, single buffered']
    #allocation9 [shape = 's32[1]{0}', space=sflag, size = 0x4, scoped, tag = 'scoped memory for mh_att.1']
    %16 = vsyncpa [#allocation9], 0
    // Predicated region
    $region2: #{mh_att.1} parent=1 // pred_check
      _
    $region3: #{mh_att.1} parent=1 // pred_check_branch
      %18 = sbr.rel (0) target = $region5
    $region4: #{mh_att.1} parent=1 // pred_region
      _
    $region5: #{mh_att.1} parent=1 // pred_fallthru
      _
    // Predicated region
    $region6: #{mh_att.1} parent=1 // pred_check
      _
    $region7: #{mh_att.1} parent=1 // pred_check_branch
      %20 = sbr.rel (0) target = $region9
    $region8: #{mh_att.1} parent=1 // pred_region
      %s21 = sld [smem:[#allocation7]]
      %s22 = ssub.s32 %s21, 1
      %p23 = scmp.lt.s32.totalorder 0, %s22
      %s24 = scalar_select %p23, 0, %s22
      %p25 = scmp.gt.s32.totalorder %s24, 0
      %s26 = scalar_select %p25, %s24, 0
      %s27 = sshra.s32 %s26, 7
      %s28 = sand.u32 %s26, 127
      %s29 = sadd.s32 %s27, 0
      %s30 = smul.u32 %s29, 128
      %s31 = sshra.s32 %s26, 7
      %s32 = sand.u32 %s26, 127
      %s33 = sadd.s32 %s30, %s32
      %s34 = sld [smem:[#allocation6 + %s33]]
      %p35 = scmp.lt.s32.totalorder %s34, 0
      %s36 = scalar_select %p35, %s34, 0
      %s37 = smul.addr %s36, 4
      %s38 = scalar_lea.vmem %s3, %s37
      %s39 = sld [smem:[#allocation7]]
      %s40 = ssub.s32 %s39, 1
      %p41 = scmp.lt.s32.totalorder 0, %s40
      %s42 = scalar_select %p41, 0, %s40
      %p43 = scmp.gt.s32.totalorder %s42, 0
      %s44 = scalar_select %p43, %s42, 0
      %s45 = sshra.s32 %s44, 7
      %s46 = sand.u32 %s44, 127
      %s47 = sadd.s32 %s45, 0
      %s48 = smul.u32 %s47, 128
      %s49 = sshra.s32 %s44, 7
      %s50 = sand.u32 %s44, 127
      %s51 = sadd.s32 %s48, %s50
      %s52 = sld [smem:[#allocation6 + %s51]]
    $region9: #{mh_att.1} parent=1 // pred_fallthru
      _
    // Predicated region
    $region10: #{mh_att.1} parent=1 // pred_check
      _
    $region11: #{mh_att.1} parent=1 // pred_check_branch
      %54 = sbr.rel (0) target = $region13
    $region12: #{mh_att.1} parent=1 // pred_region
      %s55 = sld [smem:[#allocation7]]
      %s56 = ssub.s32 %s55, 1
      %p57 = scmp.lt.s32.totalorder 0, %s56
      %s58 = scalar_select %p57, 0, %s56
      %p59 = scmp.gt.s32.totalorder %s58, 0
      %s60 = scalar_select %p59, %s58, 0
      %s61 = sshra.s32 %s60, 7
      %s62 = sand.u32 %s60, 127
      %s63 = sadd.s32 %s61, 0
      %s64 = smul.u32 %s63, 128
      %s65 = sshra.s32 %s60, 7
      %s66 = sand.u32 %s60, 127
      %s67 = sadd.s32 %s64, %s66
      %s68 = sld [smem:[#allocation6 + %s67]]
      %s69 = smul.u32 16, %s68
      %p70 = scmp.lt.s32.totalorder %s69, 15
      %s71 = scalar_select %p70, %s69, 15
      %s72 = smul.addr %s71, 4
      %s73 = scalar_lea.vmem %s4, %s72
      %s74 = sld [smem:[#allocation7]]
      %s75 = ssub.s32 %s74, 1
      %p76 = scmp.lt.s32.totalorder 0, %s75
      %s77 = scalar_select %p76, 0, %s75
      %p78 = scmp.gt.s32.totalorder %s77, 0
      %s79 = scalar_select %p78, %s77, 0
      %s80 = sshra.s32 %s79, 7
      %s81 = sand.u32 %s79, 127
      %s82 = sadd.s32 %s80, 0
      %s83 = smul.u32 %s82, 128
      %s84 = sshra.s32 %s79, 7
      %s85 = sand.u32 %s79, 127
      %s86 = sadd.s32 %s83, %s85
      %s87 = sld [smem:[#allocation6 + %s86]]
      %s88 = smul.u32 16, %s87
    $region13: #{mh_att.1} parent=1 // pred_fallthru
      _
    // Predicated region
    $region14: #{mh_att.1} parent=1 // pred_check
      _
    $region15: #{mh_att.1} parent=1 // pred_check_branch
      %90 = sbr.rel (0) target = $region17
    $region16: #{mh_att.1} parent=1 // pred_region
      _
    $region17: #{mh_att.1} parent=1 // pred_fallthru
      _
    // Predicated region
    $region18: #{mh_att.1} parent=1 // pred_check
      _
    $region19: #{mh_att.1} parent=1 // pred_check_branch
      %92 = sbr.rel (0) target = $region21
    $region20: #{mh_att.1} parent=1 // pred_region
      %s93 = sld [smem:[#allocation7]]
      %s94 = ssub.s32 %s93, 1
      %p95 = scmp.lt.s32.totalorder 0, %s94
      %s96 = scalar_select %p95, 0, %s94
      %p97 = scmp.gt.s32.totalorder %s96, 0
      %s98 = scalar_select %p97, %s96, 0
      %s99 = sshra.s32 %s98, 7
      %s100 = sand.u32 %s98, 127
      %s101 = sadd.s32 %s99, 0
      %s102 = smul.u32 %s101, 128
      %s103 = sshra.s32 %s98, 7
      %s104 = sand.u32 %s98, 127
      %s105 = sadd.s32 %s102, %s104
      %s106 = sld [smem:[#allocation6 + %s105]]
      %p107 = scmp.lt.s32.totalorder %s106, 0
      %s108 = scalar_select %p107, %s106, 0
      %s109 = scalar_lea.vmem %s6, %s108
      %s110 = sld [smem:[#allocation7]]
      %s111 = ssub.s32 %s110, 1
      %p112 = scmp.lt.s32.totalorder 0, %s111
      %s113 = scalar_select %p112, 0, %s111
      %p114 = scmp.gt.s32.totalorder %s113, 0
      %s115 = scalar_select %p114, %s113, 0
      %s116 = sshra.s32 %s115, 7
      %s117 = sand.u32 %s115, 127
      %s118 = sadd.s32 %s116, 0
      %s119 = smul.u32 %s118, 128
      %s120 = sshra.s32 %s115, 7
      %s121 = sand.u32 %s115, 127
      %s122 = sadd.s32 %s119, %s121
      %s123 = sld [smem:[#allocation6 + %s122]]
    $region21: #{mh_att.1} parent=1 // pred_fallthru
      _
    // Predicated region
    $region22: #{mh_att.1} parent=1 // pred_check
      _
    $region23: #{mh_att.1} parent=1 // pred_check_branch
      %125 = sbr.rel (0) target = $region25
    $region24: #{mh_att.1} parent=1 // pred_region
      _
    $region25: #{mh_att.1} parent=1 // pred_fallthru
      _
    // Predicated region
    $region26: #{mh_att.1} parent=1 // pred_check
      _
    $region27: #{mh_att.1} parent=1 // pred_check_branch
      %127 = sbr.rel (0) target = $region29
    $region28: #{mh_att.1} parent=1 // pred_region
      _
    $region29: #{mh_att.1} parent=1 // pred_fallthru
      _
    %s128 = sld [smem:[#allocation7]]
    %s129 = ssub.s32 %s128, 1
    %p130 = scmp.lt.s32.totalorder 0, %s129
    %s131 = scalar_select %p130, 0, %s129
    %p132 = scmp.gt.s32.totalorder %s131, 0
    %s133 = scalar_select %p132, %s131, 0
    %s134 = sshra.s32 %s133, 7
    %s135 = sand.u32 %s133, 127
    %s136 = sadd.s32 %s134, 0
    %s137 = smul.u32 %s136, 128
    %s138 = sshra.s32 %s133, 7
    %s139 = sand.u32 %s133, 127
    %s140 = sadd.s32 %s137, %s139
    %s141 = sld [smem:[#allocation6 + %s140]]
    %p142 = scmp.lt.s32.totalorder %s141, 0
    %s143 = scalar_select %p142, %s141, 0
    %s144 = smul.addr %s143, 4
    %s145 = scalar_lea.vmem %s3, %s144
    %s146 = sld [smem:[#allocation7]]
    %s147 = ssub.s32 %s146, 1
    %p148 = scmp.lt.s32.totalorder 0, %s147
    %s149 = scalar_select %p148, 0, %s147
    %p150 = scmp.gt.s32.totalorder %s149, 0
    %s151 = scalar_select %p150, %s149, 0
    %s152 = sshra.s32 %s151, 7
    %s153 = sand.u32 %s151, 127
    %s154 = sadd.s32 %s152, 0
    %s155 = smul.u32 %s154, 128
    %s156 = sshra.s32 %s151, 7
    %s157 = sand.u32 %s151, 127
    %s158 = sadd.s32 %s155, %s157
    %s159 = sld [smem:[#allocation6 + %s158]]
    %s160 = smul.u32 16, %s159
    %p161 = scmp.lt.s32.totalorder %s160, 15
    %s162 = scalar_select %p161, %s160, 15
    %s163 = smul.addr %s162, 4
    %s164 = scalar_lea.vmem %s4, %s163
    %s165 = sld [smem:[#allocation7]]
    %s166 = ssub.s32 %s165, 1
    %p167 = scmp.lt.s32.totalorder 0, %s166
    %s168 = scalar_select %p167, 0, %s166
    %p169 = scmp.gt.s32.totalorder %s168, 0
    %s170 = scalar_select %p169, %s168, 0
    %s171 = sshra.s32 %s170, 7
    %s172 = sand.u32 %s170, 127
    %s173 = sadd.s32 %s171, 0
    %s174 = smul.u32 %s173, 128
    %s175 = sshra.s32 %s170, 7
    %s176 = sand.u32 %s170, 127
    %s177 = sadd.s32 %s174, %s176
    %s178 = sld [smem:[#allocation6 + %s177]]
    %p179 = scmp.lt.s32.totalorder %s178, 0
    %s180 = scalar_select %p179, %s178, 0
    %s181 = scalar_lea.vmem %s6, %s180
    %s182 = sld [smem:[#allocation7]]
    %s183 = ssub.s32 %s182, 1
    %p184 = scmp.lt.s32.totalorder 0, %s183
    %s185 = scalar_select %p184, 0, %s183
    %p186 = scmp.gt.s32.totalorder %s185, 0
    %s187 = scalar_select %p186, %s185, 0
    %s188 = sshra.s32 %s187, 7
    %s189 = sand.u32 %s187, 127
    %s190 = sadd.s32 %s188, 0
    %s191 = smul.u32 %s190, 128
    %s192 = sshra.s32 %s187, 7
    %s193 = sand.u32 %s187, 127
    %s194 = sadd.s32 %s191, %s193
    %s195 = sld [smem:[#allocation6 + %s194]]
    %p196 = scmp.lt.s32.totalorder %s195, 0
    %s197 = scalar_select %p196, %s195, 0
    %s198 = smul.addr %s197, 4
    %s199 = scalar_lea.vmem %s3, %s198
    %s200 = sld [smem:[#allocation7]]
    %s201 = ssub.s32 %s200, 1
    %p202 = scmp.lt.s32.totalorder 0, %s201
    %s203 = scalar_select %p202, 0, %s201
    %p204 = scmp.gt.s32.totalorder %s203, 0
    %s205 = scalar_select %p204, %s203, 0
    %s206 = sshra.s32 %s205, 7
    %s207 = sand.u32 %s205, 127
    %s208 = sadd.s32 %s206, 0
    %s209 = smul.u32 %s208, 128
    %s210 = sshra.s32 %s205, 7
    %s211 = sand.u32 %s205, 127
    %s212 = sadd.s32 %s209, %s211
    %s213 = sld [smem:[#allocation6 + %s212]]
    %s214 = sld [smem:[#allocation7]]
    %s215 = ssub.s32 %s214, 1
    %p216 = scmp.lt.s32.totalorder 0, %s215
    %s217 = scalar_select %p216, 0, %s215
    %p218 = scmp.gt.s32.totalorder %s217, 0
    %s219 = scalar_select %p218, %s217, 0
    %s220 = sshra.s32 %s219, 7
    %s221 = sand.u32 %s219, 127
    %s222 = sadd.s32 %s220, 0
    %s223 = smul.u32 %s222, 128
    %s224 = sshra.s32 %s219, 7
    %s225 = sand.u32 %s219, 127
    %s226 = sadd.s32 %s223, %s225
    %s227 = sld [smem:[#allocation6 + %s226]]
    %s228 = smul.u32 16, %s227
    %p229 = scmp.lt.s32.totalorder %s228, 15
    %s230 = scalar_select %p229, %s228, 15
    %s231 = smul.addr %s230, 4
    %s232 = scalar_lea.vmem %s4, %s231
    %s233 = sld [smem:[#allocation7]]
    %s234 = ssub.s32 %s233, 1
    %p235 = scmp.lt.s32.totalorder 0, %s234
    %s236 = scalar_select %p235, 0, %s234
    %p237 = scmp.gt.s32.totalorder %s236, 0
    %s238 = scalar_select %p237, %s236, 0
    %s239 = sshra.s32 %s238, 7
    %s240 = sand.u32 %s238, 127
    %s241 = sadd.s32 %s239, 0
    %s242 = smul.u32 %s241, 128
    %s243 = sshra.s32 %s238, 7
    %s244 = sand.u32 %s238, 127
    %s245 = sadd.s32 %s242, %s244
    %s246 = sld [smem:[#allocation6 + %s245]]
    %s247 = smul.u32 16, %s246
    %s248 = sld [smem:[#allocation7]]
    %s249 = ssub.s32 %s248, 1
    %p250 = scmp.lt.s32.totalorder 0, %s249
    %s251 = scalar_select %p250, 0, %s249
    %p252 = scmp.gt.s32.totalorder %s251, 0
    %s253 = scalar_select %p252, %s251, 0
    %s254 = sshra.s32 %s253, 7
    %s255 = sand.u32 %s253, 127
    %s256 = sadd.s32 %s254, 0
    %s257 = smul.u32 %s256, 128
    %s258 = sshra.s32 %s253, 7
    %s259 = sand.u32 %s253, 127
    %s260 = sadd.s32 %s257, %s259
    %s261 = sld [smem:[#allocation6 + %s260]]
    %p262 = scmp.lt.s32.totalorder %s261, 0
    %s263 = scalar_select %p262, %s261, 0
    %s264 = scalar_lea.vmem %s6, %s263
    %s265 = sld [smem:[#allocation7]]
    %s266 = ssub.s32 %s265, 1
    %p267 = scmp.lt.s32.totalorder 0, %s266
    %s268 = scalar_select %p267, 0, %s266
    %p269 = scmp.gt.s32.totalorder %s268, 0
    %s270 = scalar_select %p269, %s268, 0
    %s271 = sshra.s32 %s270, 7
    %s272 = sand.u32 %s270, 127
    %s273 = sadd.s32 %s271, 0
    %s274 = smul.u32 %s273, 128
    %s275 = sshra.s32 %s270, 7
    %s276 = sand.u32 %s270, 127
    %s277 = sadd.s32 %s274, %s276
    %s278 = sld [smem:[#allocation6 + %s277]]
    %p280 = scmp.eq.s32.totalorder 0, 0
    // Predicated region
    $region30: #{mh_att.1} parent=1 // pred_check
      %p281 = pneg %p280
    $region31: #{mh_att.1} parent=1 // pred_check_branch
      %283 = sbr.rel (%p281) target = $region33
    $region32: #{mh_att.1} parent=1 // pred_region
      %284 = vst [vmem:[#allocation3] sm:$0xff] -1e+30
      %285 = vst [vmem:[#allocation4] sm:$0xff] 0.0
      %286 = vst [vmem:[#allocation2] sm:$0xff] 0.0
    $region33: #{mh_att.1} parent=1 // pred_fallthru
      _
    %s287 = sld [smem:[#allocation7]]
    %p288 = scmp.lt.s32.totalorder 0, %s287
    // Predicated region
    $region34: #{mh_att.1} parent=1 // pred_check
      %p289 = pneg %p288
    $region35: #{mh_att.1} parent=1 // pred_check_branch
      %291 = sbr.rel (%p289) target = $region37
    $region36: #{mh_att.1} parent=1 // pred_region
      %v292 = vld [vmem:[%s5] sm:$0xff]
      %v293 = vld [vmem:[%s264] sm:$0x1]
      %294 = vset.pattern.permute.xlu0 0
      %295 = vperm.xlu0 %294, %v292
      %v296 = vpop.permute.xlu0 %295
      %v297 = vperm.slane %v293, 0
      %vm298 = vcmp.eq.s32.totalorder %v296, %v297
      %v299 = vld [vmem:[%s2] sm:$0xf]
      %v300 = vld [vmem:[%s199] sm:$0xf]
      %v301 = vld [vmem:[%s199 + $0x4] sm:$0xf]
      %v302 = vld [vmem:[%s199 + $0x8] sm:$0xf]
      %v303 = vld [vmem:[%s199 + $0xc] sm:$0xf]
      %v304 = vld [vmem:[%s199 + $0x10] sm:$0xf]
      %v305 = vld [vmem:[%s199 + $0x14] sm:$0xf]
      %v306 = vld [vmem:[%s199 + $0x18] sm:$0xf]
      %v307 = vld [vmem:[%s199 + $0x1c] sm:$0xf]
      %v308 = vld [vmem:[%s199 + $0x20] sm:$0xf]
      %v309 = vld [vmem:[%s199 + $0x24] sm:$0xf]
      %v310 = vld [vmem:[%s199 + $0x28] sm:$0xf]
      %v311 = vld [vmem:[%s199 + $0x2c] sm:$0xf]
      %v312 = vld [vmem:[%s199 + $0x30] sm:$0xf]
      %v313 = vld [vmem:[%s199 + $0x34] sm:$0xf]
      %v314 = vld [vmem:[%s199 + $0x38] sm:$0xf]
      %v315 = vld [vmem:[%s199 + $0x3c] sm:$0xf]
      %v316 = vld [vmem:[%s232] sm:$0xf]
      %v317 = vld [vmem:[%s232 + $0x4] sm:$0xf]
      %v318 = vld [vmem:[%s232 + $0x8] sm:$0xf]
      %v319 = vld [vmem:[%s232 + $0xc] sm:$0xf]
      %v320 = vld [vmem:[%s232 + $0x10] sm:$0xf]
      %v321 = vld [vmem:[%s232 + $0x14] sm:$0xf]
      %v322 = vld [vmem:[%s232 + $0x18] sm:$0xf]
      %v323 = vld [vmem:[%s232 + $0x1c] sm:$0xf]
      %v324 = vld [vmem:[%s232 + $0x20] sm:$0xf]
      %v325 = vld [vmem:[%s232 + $0x24] sm:$0xf]
      %v326 = vld [vmem:[%s232 + $0x28] sm:$0xf]
      %v327 = vld [vmem:[%s232 + $0x2c] sm:$0xf]
      %v328 = vld [vmem:[%s232 + $0x30] sm:$0xf]
      %v329 = vld [vmem:[%s232 + $0x34] sm:$0xf]
      %v330 = vld [vmem:[%s232 + $0x38] sm:$0xf]
      %v331 = vld [vmem:[%s232 + $0x3c] sm:$0xf]
      %v332 = vld [vmem:[#allocation3] sm:$0xff]
      %v333 = vld [vmem:[#allocation4] sm:$0xff]
      %v334 = vld [vmem:[#allocation2] sm:$0xff]
      %v339 = vunpack.c.l.b16 %v300
      %v340 = vunpack.c.l.b16 %v301
      %v341 = vunpack.c.l.b16 %v302
      %v342 = vunpack.c.l.b16 %v303
      %v343 = vpack.c.b16 %v340, %v339
      %v344 = vpack.c.b16 %v342, %v341
      %vm347 = vcmask 261120
      %v349 = vsel %vm347, %v299, 0
      %351 = vmatpush.bf16.msra.mxu0 0
      %352 = vmatpush.bf16.msra.mxu0 0
      %353 = vmatpush.bf16.msra.mxu0 0
      %354 = vmatpush.bf16.msra.mxu0 0
      %355 = vmatpush.bf16.msra.mxu0 0
      %356 = vmatpush.bf16.msra.mxu0 0
      %357 = vmatpush.bf16.msra.mxu0 %v344
      %358 = vmatpush.bf16.msra.mxu0 %v343
      %359 = vmatmul.bf16.gmra.mxu0 %v349
      %v360 = vpop.f32.mrf.mxu0
      %v361 = vadd.f32 0.0, %v360
      %v362 = vpop.f32.mrf.mxu0
      %363 = vdwg.mxu0
      %v364 = vsel %vm298, %v361, -1e+30
      %365 = vmax.xlane.f32.xlu0 %v364
      %v366 = vpop.xlane.xlu0 %365
      %v367 = vmax.f32 %v332, %v366
      %v368 = vsub.f32 %v332, %v367
      %v369 = vmul.f32 %v368, 1.442695
      %v370 = vpow.pop %v369
      %372 = vset.pattern.permute.xlu0 0
      %373 = vperm.xlu0 %372, %v367
      %v374 = vpop.permute.xlu0 %373
      %v376 = vsub.f32 %v364, %v374
      %v377 = vmul.f32 %v376, 1.442695
      %v378 = vpow.pop %v377
      %v379 = vsel %vm298, %v378, 0.0
      %v380 = vmul.f32 %v370, %v333
      %381 = vadd.xlane.f32.xlu0 %v379
      %v382 = vpop.xlane.xlu0 %381
      %v383 = vadd.f32 %v380, %v382
      %v384 = vmul.f32 %v370, %v334
      %v385 = vpack.c.bf16 %v379, %v379
      %v402 = vunpack.c.l.b16 %v316
      %v403 = vunpack.c.l.b16 %v317
      %v404 = vunpack.c.l.b16 %v318
      %v405 = vunpack.c.l.b16 %v319
      %v406 = vunpack.c.l.b16 %v320
      %v407 = vunpack.c.l.b16 %v321
      %v408 = vunpack.c.l.b16 %v322
      %v409 = vunpack.c.l.b16 %v323
      %v410 = vunpack.c.l.b16 %v324
      %v411 = vunpack.c.l.b16 %v325
      %v412 = vunpack.c.l.b16 %v326
      %v413 = vunpack.c.l.b16 %v327
      %v414 = vunpack.c.l.b16 %v328
      %v415 = vunpack.c.l.b16 %v329
      %v416 = vunpack.c.l.b16 %v330
      %v417 = vunpack.c.l.b16 %v331
      %v418 = vpack.c.b16 %v403, %v402
      %v419 = vpack.c.b16 %v405, %v404
      %v420 = vpack.c.b16 %v407, %v406
      %v421 = vpack.c.b16 %v409, %v408
      %v422 = vpack.c.b16 %v411, %v410
      %v423 = vpack.c.b16 %v413, %v412
      %v424 = vpack.c.b16 %v415, %v414
      %v425 = vpack.c.b16 %v417, %v416
      %434 = vmatpush.bf16.msra.mxu0 %v425
      %435 = vmatpush.bf16.msra.mxu0 %v424
      %436 = vmatpush.bf16.msra.mxu0 %v423
      %437 = vmatpush.bf16.msra.mxu0 %v422
      %438 = vmatpush.bf16.msra.mxu0 %v421
      %439 = vmatpush.bf16.msra.mxu0 %v420
      %440 = vmatpush.bf16.msra.mxu0 %v419
      %441 = vmatpush.bf16.msra.mxu0 %v418
      %442 = vmatmul.bf16.gmra.mxu0 %v385
      %v443 = vpop.f32.mrf.mxu0
      %v444 = vadd.f32 0.0, %v443
      %v445 = vpop.f32.mrf.mxu0
      %446 = vdwg.mxu0
      %v447 = vadd.f32 %v384, %v444
      %v449 = vunpack.c.l.b16 %v299
      %v450 = vpack.c.b16 %v449, %v449
      %451 = vrot.lane.b32.xlu0 %v450, 96
      %v452 = vpop.permute.xlu0 %451
      %v457 = vunpack.c.l.b16 %v304
      %v458 = vunpack.c.l.b16 %v305
      %v459 = vunpack.c.l.b16 %v306
      %v460 = vunpack.c.l.b16 %v307
      %v461 = vpack.c.b16 %v458, %v457
      %v462 = vpack.c.b16 %v460, %v459
      %v466 = vsel %vm347, %v452, 0
      %468 = vmatpush.bf16.msra.mxu0 0
      %469 = vmatpush.bf16.msra.mxu0 0
      %470 = vmatpush.bf16.msra.mxu0 0
      %471 = vmatpush.bf16.msra.mxu0 0
      %472 = vmatpush.bf16.msra.mxu0 0
      %473 = vmatpush.bf16.msra.mxu0 0
      %474 = vmatpush.bf16.msra.mxu0 %v462
      %475 = vmatpush.bf16.msra.mxu0 %v461
      %476 = vmatmul.bf16.gmra.mxu0 %v466
      %v477 = vpop.f32.mrf.mxu0
      %v478 = vadd.f32 0.0, %v477
      %v479 = vpop.f32.mrf.mxu0
      %480 = vdwg.mxu0
      %v481 = vsel %vm298, %v478, -1e+30
      %482 = vmax.xlane.f32.xlu0 %v481
      %v483 = vpop.xlane.xlu0 %482
      %v484 = vmax.f32 %v332, %v483
      %v485 = vsub.f32 %v332, %v484
      %v486 = vmul.f32 %v485, 1.442695
      %v487 = vpow.pop %v486
      %489 = vset.pattern.permute.xlu0 32
      %490 = vperm.xlu0 %489, %v484
      %v491 = vpop.permute.xlu0 %490
      %v493 = vsub.f32 %v481, %v491
      %v494 = vmul.f32 %v493, 1.442695
      %v495 = vpow.pop %v494
      %v496 = vsel %vm298, %v495, 0.0
      %v497 = vmul.f32 %v487, %v333
      %498 = vadd.xlane.f32.xlu0 %v496
      %v499 = vpop.xlane.xlu0 %498
      %v500 = vadd.f32 %v497, %v499
      %v501 = vmul.f32 %v487, %v334
      %v502 = vpack.c.bf16 %v496, %v496
      %503 = vrot.lane.b32.xlu0 %v418, 96
      %v504 = vpop.permute.xlu0 %503
      %505 = vrot.lane.b32.xlu0 %v419, 96
      %v506 = vpop.permute.xlu0 %505
      %507 = vrot.lane.b32.xlu0 %v420, 96
      %v508 = vpop.permute.xlu0 %507
      %509 = vrot.lane.b32.xlu0 %v421, 96
      %v510 = vpop.permute.xlu0 %509
      %511 = vrot.lane.b32.xlu0 %v422, 96
      %v512 = vpop.permute.xlu0 %511
      %513 = vrot.lane.b32.xlu0 %v423, 96
      %v514 = vpop.permute.xlu0 %513
      %515 = vrot.lane.b32.xlu0 %v424, 96
      %v516 = vpop.permute.xlu0 %515
      %517 = vrot.lane.b32.xlu0 %v425, 96
      %v518 = vpop.permute.xlu0 %517
      %527 = vmatpush.bf16.msra.mxu0 %v518
      %528 = vmatpush.bf16.msra.mxu0 %v516
      %529 = vmatpush.bf16.msra.mxu0 %v514
      %530 = vmatpush.bf16.msra.mxu0 %v512
      %531 = vmatpush.bf16.msra.mxu0 %v510
      %532 = vmatpush.bf16.msra.mxu0 %v508
      %533 = vmatpush.bf16.msra.mxu0 %v506
      %534 = vmatpush.bf16.msra.mxu0 %v504
      %535 = vmatmul.bf16.gmra.mxu0 %v502
      %v536 = vpop.f32.mrf.mxu0
      %v537 = vadd.f32 0.0, %v536
      %v538 = vpop.f32.mrf.mxu0
      %539 = vdwg.mxu0
      %541 = vrot.lane.b32.xlu0 %v537, 32
      %v542 = vpop.permute.xlu0 %541
      %v544 = vadd.f32 %v501, %v542
      %545 = vrot.lane.b32.xlu0 %v450, 64
      %v546 = vpop.permute.xlu0 %545
      %v551 = vunpack.c.l.b16 %v308
      %v552 = vunpack.c.l.b16 %v309
      %v553 = vunpack.c.l.b16 %v310
      %v554 = vunpack.c.l.b16 %v311
      %v555 = vpack.c.b16 %v552, %v551
      %v556 = vpack.c.b16 %v554, %v553
      %v560 = vsel %vm347, %v546, 0
      %562 = vmatpush.bf16.msra.mxu0 0
      %563 = vmatpush.bf16.msra.mxu0 0
      %564 = vmatpush.bf16.msra.mxu0 0
      %565 = vmatpush.bf16.msra.mxu0 0
      %566 = vmatpush.bf16.msra.mxu0 0
      %567 = vmatpush.bf16.msra.mxu0 0
      %568 = vmatpush.bf16.msra.mxu0 %v556
      %569 = vmatpush.bf16.msra.mxu0 %v555
      %570 = vmatmul.bf16.gmra.mxu0 %v560
      %v571 = vpop.f32.mrf.mxu0
      %v572 = vadd.f32 0.0, %v571
      %v573 = vpop.f32.mrf.mxu0
      %574 = vdwg.mxu0
      %v575 = vsel %vm298, %v572, -1e+30
      %576 = vmax.xlane.f32.xlu0 %v575
      %v577 = vpop.xlane.xlu0 %576
      %v578 = vmax.f32 %v332, %v577
      %v579 = vsub.f32 %v332, %v578
      %v580 = vmul.f32 %v579, 1.442695
      %v581 = vpow.pop %v580
      %583 = vset.pattern.permute.xlu0 64
      %584 = vperm.xlu0 %583, %v578
      %v585 = vpop.permute.xlu0 %584
      %v587 = vsub.f32 %v575, %v585
      %v588 = vmul.f32 %v587, 1.442695
      %v589 = vpow.pop %v588
      %v590 = vsel %vm298, %v589, 0.0
      %v591 = vmul.f32 %v581, %v333
      %592 = vadd.xlane.f32.xlu0 %v590
      %v593 = vpop.xlane.xlu0 %592
      %v594 = vadd.f32 %v591, %v593
      %v595 = vmul.f32 %v581, %v334
      %v596 = vpack.c.bf16 %v590, %v590
      %597 = vrot.lane.b32.xlu0 %v418, 64
      %v598 = vpop.permute.xlu0 %597
      %599 = vrot.lane.b32.xlu0 %v419, 64
      %v600 = vpop.permute.xlu0 %599
      %601 = vrot.lane.b32.xlu0 %v420, 64
      %v602 = vpop.permute.xlu0 %601
      %603 = vrot.lane.b32.xlu0 %v421, 64
      %v604 = vpop.permute.xlu0 %603
      %605 = vrot.lane.b32.xlu0 %v422, 64
      %v606 = vpop.permute.xlu0 %605
      %607 = vrot.lane.b32.xlu0 %v423, 64
      %v608 = vpop.permute.xlu0 %607
      %609 = vrot.lane.b32.xlu0 %v424, 64
      %v610 = vpop.permute.xlu0 %609
      %611 = vrot.lane.b32.xlu0 %v425, 64
      %v612 = vpop.permute.xlu0 %611
      %621 = vmatpush.bf16.msra.mxu0 %v612
      %622 = vmatpush.bf16.msra.mxu0 %v610
      %623 = vmatpush.bf16.msra.mxu0 %v608
      %624 = vmatpush.bf16.msra.mxu0 %v606
      %625 = vmatpush.bf16.msra.mxu0 %v604
      %626 = vmatpush.bf16.msra.mxu0 %v602
      %627 = vmatpush.bf16.msra.mxu0 %v600
      %628 = vmatpush.bf16.msra.mxu0 %v598
      %629 = vmatmul.bf16.gmra.mxu0 %v596
      %v630 = vpop.f32.mrf.mxu0
      %v631 = vadd.f32 0.0, %v630
      %v632 = vpop.f32.mrf.mxu0
      %633 = vdwg.mxu0
      %635 = vrot.lane.b32.xlu0 %v631, 64
      %v636 = vpop.permute.xlu0 %635
      %v638 = vadd.f32 %v595, %v636
      %639 = vrot.lane.b32.xlu0 %v450, 32
      %v640 = vpop.permute.xlu0 %639
      %v645 = vunpack.c.l.b16 %v312
      %v646 = vunpack.c.l.b16 %v313
      %v647 = vunpack.c.l.b16 %v314
      %v648 = vunpack.c.l.b16 %v315
      %v649 = vpack.c.b16 %v646, %v645
      %v650 = vpack.c.b16 %v648, %v647
      %v654 = vsel %vm347, %v640, 0
      %656 = vmatpush.bf16.msra.mxu0 0
      %657 = vmatpush.bf16.msra.mxu0 0
      %658 = vmatpush.bf16.msra.mxu0 0
      %659 = vmatpush.bf16.msra.mxu0 0
      %660 = vmatpush.bf16.msra.mxu0 0
      %661 = vmatpush.bf16.msra.mxu0 0
      %662 = vmatpush.bf16.msra.mxu0 %v650
      %663 = vmatpush.bf16.msra.mxu0 %v649
      %664 = vmatmul.bf16.gmra.mxu0 %v654
      %v665 = vpop.f32.mrf.mxu0
      %v666 = vadd.f32 0.0, %v665
      %v667 = vpop.f32.mrf.mxu0
      %668 = vdwg.mxu0
      %v669 = vsel %vm298, %v666, -1e+30
      %670 = vmax.xlane.f32.xlu0 %v669
      %v671 = vpop.xlane.xlu0 %670
      %v672 = vmax.f32 %v332, %v671
      %v673 = vsub.f32 %v332, %v672
      %v674 = vmul.f32 %v673, 1.442695
      %v675 = vpow.pop %v674
      %677 = vset.pattern.permute.xlu0 96
      %678 = vperm.xlu0 %677, %v672
      %v679 = vpop.permute.xlu0 %678
      %v681 = vsub.f32 %v669, %v679
      %v682 = vmul.f32 %v681, 1.442695
      %v683 = vpow.pop %v682
      %v684 = vsel %vm298, %v683, 0.0
      %v685 = vmul.f32 %v675, %v333
      %686 = vadd.xlane.f32.xlu0 %v684
      %v687 = vpop.xlane.xlu0 %686
      %v688 = vadd.f32 %v685, %v687
      %v689 = vmul.f32 %v675, %v334
      %v690 = vpack.c.bf16 %v684, %v684
      %691 = vrot.lane.b32.xlu0 %v418, 32
      %v692 = vpop.permute.xlu0 %691
      %693 = vrot.lane.b32.xlu0 %v419, 32
      %v694 = vpop.permute.xlu0 %693
      %695 = vrot.lane.b32.xlu0 %v420, 32
      %v696 = vpop.permute.xlu0 %695
      %697 = vrot.lane.b32.xlu0 %v421, 32
      %v698 = vpop.permute.xlu0 %697
      %699 = vrot.lane.b32.xlu0 %v422, 32
      %v700 = vpop.permute.xlu0 %699
      %701 = vrot.lane.b32.xlu0 %v423, 32
      %v702 = vpop.permute.xlu0 %701
      %703 = vrot.lane.b32.xlu0 %v424, 32
      %v704 = vpop.permute.xlu0 %703
      %705 = vrot.lane.b32.xlu0 %v425, 32
      %v706 = vpop.permute.xlu0 %705
      %715 = vmatpush.bf16.msra.mxu0 %v706
      %716 = vmatpush.bf16.msra.mxu0 %v704
      %717 = vmatpush.bf16.msra.mxu0 %v702
      %718 = vmatpush.bf16.msra.mxu0 %v700
      %719 = vmatpush.bf16.msra.mxu0 %v698
      %720 = vmatpush.bf16.msra.mxu0 %v696
      %721 = vmatpush.bf16.msra.mxu0 %v694
      %722 = vmatpush.bf16.msra.mxu0 %v692
      %723 = vmatmul.bf16.gmra.mxu0 %v690
      %v724 = vpop.f32.mrf.mxu0
      %v725 = vadd.f32 0.0, %v724
      %v726 = vpop.f32.mrf.mxu0
      %727 = vdwg.mxu0
      %729 = vrot.lane.b32.xlu0 %v725, 96
      %v730 = vpop.permute.xlu0 %729
      %v732 = vadd.f32 %v689, %v730
      %v733 = vsel %vm347, %v447, %v544
      %vm734 = vcmask 523264
      %v735 = vsel %vm734, %v733, %v638
      %vm736 = vcmask 785408
      %v737 = vsel %vm736, %v735, %v732
      %738 = vst [vmem:[#allocation2] sm:$0xff] %v737
      %v739 = vsel %vm347, %v367, %v484
      %v740 = vsel %vm734, %v739, %v578
      %v741 = vsel %vm736, %v740, %v672
      %742 = vst [vmem:[#allocation3] sm:$0xff] %v741
      %v743 = vsel %vm347, %v383, %v500
      %v744 = vsel %vm734, %v743, %v594
      %v745 = vsel %vm736, %v744, %v688
      %746 = vst [vmem:[#allocation4] sm:$0xff] %v745
    $region37: #{mh_att.1} parent=1 // pred_fallthru
      _
    // Predicated region
    $region38: #{mh_att.1} parent=1 // pred_check
      %p747 = pneg %p280
    $region39: #{mh_att.1} parent=1 // pred_check_branch
      %749 = sbr.rel (%p747) target = $region41
    $region40: #{mh_att.1} parent=1 // pred_region
      %v750 = vld [vmem:[#allocation4] sm:$0xff]
      %vm751 = vcmp.gt.f32.partialorder %v750, 0.0
      %v752 = vsel %vm751, %v750, 1.0
      %v753 = vrcp.pop %v752
      %v754 = vmul.f32 %v752, %v753
      %v755 = vsub.f32 2.0, %v754
      %v756 = vmul.f32 %v753, %v755
      %v757 = vsel %vm751, %v756, 0.0
      %v758 = vld [vmem:[#allocation2] sm:$0xff]
      %v759 = vmul.f32 %v758, %v757
      %v760 = vpack.c.bf16 %v759, %v759
      %v761 = vld [vmem:[%s7] sm:$0xf]
      %v762 = vld [vmem:[%s7 + $0x4] sm:$0xf]
      %v763 = vld [vmem:[%s7 + $0x8] sm:$0xf]
      %v764 = vld [vmem:[%s7 + $0xc] sm:$0xf]
      %v765 = vld [vmem:[%s7 + $0x10] sm:$0xf]
      %v766 = vld [vmem:[%s7 + $0x14] sm:$0xf]
      %v767 = vld [vmem:[%s7 + $0x18] sm:$0xf]
      %v768 = vld [vmem:[%s7 + $0x1c] sm:$0xf]
      %v769 = vld [vmem:[%s7 + $0x20] sm:$0xf]
      %v770 = vld [vmem:[%s7 + $0x24] sm:$0xf]
      %v771 = vld [vmem:[%s7 + $0x28] sm:$0xf]
      %v772 = vld [vmem:[%s7 + $0x2c] sm:$0xf]
      %v773 = vld [vmem:[%s7 + $0x30] sm:$0xf]
      %v774 = vld [vmem:[%s7 + $0x34] sm:$0xf]
      %v775 = vld [vmem:[%s7 + $0x38] sm:$0xf]
      %v776 = vld [vmem:[%s7 + $0x3c] sm:$0xf]
      %v777 = vld [vmem:[%s8] sm:$0x1]
      %v779 = vperm.slane %v777, 0
      %v797 = vunpack.c.l.b16 %v761
      %v798 = vunpack.c.l.b16 %v762
      %v799 = vunpack.c.l.b16 %v763
      %v800 = vunpack.c.l.b16 %v764
      %v801 = vunpack.c.l.b16 %v765
      %v802 = vunpack.c.l.b16 %v766
      %v803 = vunpack.c.l.b16 %v767
      %v804 = vunpack.c.l.b16 %v768
      %v805 = vunpack.c.l.b16 %v769
      %v806 = vunpack.c.l.b16 %v770
      %v807 = vunpack.c.l.b16 %v771
      %v808 = vunpack.c.l.b16 %v772
      %v809 = vunpack.c.l.b16 %v773
      %v810 = vunpack.c.l.b16 %v774
      %v811 = vunpack.c.l.b16 %v775
      %v812 = vunpack.c.l.b16 %v776
      %v813 = vpack.c.b16 %v798, %v797
      %v814 = vpack.c.b16 %v800, %v799
      %v815 = vpack.c.b16 %v802, %v801
      %v816 = vpack.c.b16 %v804, %v803
      %v817 = vpack.c.b16 %v806, %v805
      %v818 = vpack.c.b16 %v808, %v807
      %v819 = vpack.c.b16 %v810, %v809
      %v820 = vpack.c.b16 %v812, %v811
      %829 = vmatpush.bf16.msra.mxu0 %v820
      %830 = vmatpush.bf16.msra.mxu0 %v819
      %831 = vmatpush.bf16.msra.mxu0 %v818
      %832 = vmatpush.bf16.msra.mxu0 %v817
      %833 = vmatpush.bf16.msra.mxu0 %v816
      %834 = vmatpush.bf16.msra.mxu0 %v815
      %835 = vmatpush.bf16.msra.mxu0 %v814
      %836 = vmatpush.bf16.msra.mxu0 %v813
      %837 = vmatmul.bf16.gmra.mxu0 %v760
      %v838 = vpop.f32.mrf.mxu0
      %v839 = vadd.f32 %v779, %v838
      %v840 = vpop.f32.mrf.mxu0
      %841 = vdwg.mxu0
      %842 = vst [vmem:[#allocation8] sm:$0xff] %v839
    $region41: #{mh_att.1} parent=1 // pred_fallthru
      _
    // Predicated region
    $region42: #{mh_att.1} parent=1 // pred_check
      _
    $region43: #{mh_att.1} parent=1 // pred_check_branch
      %844 = sbr.rel (0) target = $region45
    $region44: #{mh_att.1} parent=1 // pred_region
      %846 = vsyncadd [#allocation9], 0
      %s848 = sshll.u32 [#allocation8], 4
      %s849 = int_to_ptr.vmem [resolvable:$true] %s848
      %s850 = sshll.u32 %s9, 4
      %s851 = int_to_ptr.hbm [resolvable:$true] %s850
      %853 = dma.vmem_to_hbm [thread:$0]  %s849, 128, %s851, [#allocation9]
    $region45: #{mh_att.1} parent=1 // pred_fallthru
      _
    // Predicated region
    $region46: #{mh_att.1} parent=1 // pred_check
      _
    $region47: #{mh_att.1} parent=1 // pred_check_branch
      %855 = sbr.rel (0) target = $region49
    $region48: #{mh_att.1} parent=1 // pred_region
      %857 = dma.done [#allocation9], 128
    $region49: #{mh_att.1} parent=1 // pred_fallthru
      _
    %858 = vsyncpa [#allocation9], 1

</llo_original>
